<compile_context>
chip_gen: v6e
topology: v6e:2x2x1
jax: 0.10.0
libtpu: 0.0.40
codegen_flags: <defaults>
</compile_context>

<pallas_src>
import functools

import jax
import jax.numpy as jnp
from jax.experimental import pallas as pl
from jax.experimental.pallas import tpu as pltpu

_EPS = 1e-8
_LANE = 128


def _pixelnorm_kernel(x_ref, o_ref, *, inv_c, c_chunk):
    # x_ref / o_ref: (C, TILE_B, 128) — batch dim squeezed out by the BlockSpec.
    c, tb, lanes = x_ref.shape
    n_chunks = c // c_chunk

    # Pass 1: sum of squares over channels, accumulated per chunk so we never
    # materialize the whole (C, TILE_B, 128) block in f32.
    ss = jnp.zeros((tb, lanes), jnp.float32)
    for i in range(n_chunks):
        xc = x_ref[i * c_chunk:(i + 1) * c_chunk, :, :].astype(jnp.float32)
        ss = ss + jnp.sum(xc * xc, axis=0)

    inv = jax.lax.rsqrt(ss * inv_c + _EPS)          # mean folded in; EUP rsqrt

    # Pass 2: apply the per-pixel scale, chunk by chunk (VMEM re-reads are cheap).
    for i in range(n_chunks):
        xc = x_ref[i * c_chunk:(i + 1) * c_chunk, :, :].astype(jnp.float32)
        o_ref[i * c_chunk:(i + 1) * c_chunk, :, :] = (
            xc * inv[None, :, :]).astype(o_ref.dtype)


def _choose_c_chunk(c, max_chunk=64):
    """Largest divisor of c that is <= max_chunk (bounds f32 temporaries)."""
    if c <= max_chunk:
        return c
    for d in range(max_chunk, 0, -1):
        if c % d == 0:
            return d
    return c


def _sublane_multiple(dtype):
    """Dtype-native sublane packing: 8 for f32, 16 for bf16, 32 for int8/fp8."""
    itemsize = jnp.dtype(dtype).itemsize
    return max(8, 32 // itemsize)


def _pick_tile_b(nb, n, c, itemsize, target_block_bytes, sub):
    """Spatial tile (in 128-lane rows): sublane-aligned, ~target_block_bytes,
    and small enough that the (N, spatial) grid has >= 4 (even) total steps."""
    if nb <= sub:
        return nb                                   # full extent (always legal)
    bytes_per_row = c * _LANE * itemsize
    cap_bytes = (target_block_bytes // max(1, bytes_per_row)) // sub * sub
    # Enough grid steps for pipelining; even total for balanced v7x megacore.
    min_total = 4
    want_spatial = max(-(-min_total // n), 2 if n == 1 else 1)
    if (n * want_spatial) % 2:
        want_spatial += 1
    cap_steps = (nb // want_spatial) // sub * sub
    return max(sub, min(cap_bytes, cap_steps))


def pixel_norm(x, *, target_block_bytes=4 << 20):
    """x: (N, C, H, W) -> (N, C, H, W), normalized over C per pixel."""
    n, c, h, w = x.shape
    hw = h * w
    inv_c = float(1.0 / c)
    itemsize = jnp.dtype(x.dtype).itemsize

    # Pad the flattened spatial axis to a multiple of 128 so every store is a
    # full-lane store.  Padded (zero) pixels normalize to 0 and are sliced off.
    hw_pad = pl.cdiv(hw, _LANE) * _LANE
    x3 = x.reshape(n, c, hw)
    if hw_pad != hw:
        x3 = jnp.pad(x3, ((0, 0), (0, 0), (0, hw_pad - hw)))
    nb = hw_pad // _LANE
    x4 = x3.reshape(n, c, nb, _LANE)

    sub = _sublane_multiple(x.dtype)
    tile_b = _pick_tile_b(nb, n, c, itemsize, target_block_bytes, sub)
    spatial_steps = pl.cdiv(nb, tile_b)
    c_chunk = _choose_c_chunk(c)

    block = (pl.Squeezed(), c, tile_b, _LANE)
    out4 = pl.pallas_call(
        functools.partial(_pixelnorm_kernel, inv_c=inv_c, c_chunk=c_chunk),
        out_shape=jax.ShapeDtypeStruct((n, c, nb, _LANE), x.dtype),
        grid_spec=pltpu.PrefetchScalarGridSpec(
            num_scalar_prefetch=0,
            grid=(n, spatial_steps),
            in_specs=[pl.BlockSpec(block, lambda i, j: (i, 0, j, 0))],
            out_specs=pl.BlockSpec(block, lambda i, j: (i, 0, j, 0)),
        ),
        compiler_params=pltpu.CompilerParams(
            dimension_semantics=("parallel", "parallel"),
            vmem_limit_bytes=48 << 20),
    )(x4)

    out = out4.reshape(n, c, hw_pad)
    if hw_pad != hw:
        out = out[:, :, :hw]
    return out.reshape(n, c, h, w)


def _reference(x):
    xf = x.astype(jnp.float32)
    out = xf * jax.lax.rsqrt(jnp.mean(xf * xf, axis=1, keepdims=True) + _EPS)
    return out.astype(x.dtype)


if __name__ == "__main__":
    key = jax.random.PRNGKey(0)

    # Main path: lane-aligned HW (16x16 = 256 = 2 * 128).
    x = jax.random.normal(key, (2, 4, 16, 16), dtype=jnp.float32)
    out = pixel_norm(x)
    jax.block_until_ready(out)
    assert out.shape == x.shape and out.dtype == x.dtype
    assert jnp.allclose(out, _reference(x), atol=1e-5, rtol=1e-5)

    # Non-lane-aligned HW (4x4): exercises the zero-pad + slice path.
    x_small = jax.random.normal(jax.random.PRNGKey(1), (2, 4, 4, 4),
                                dtype=jnp.float32)
    out_small = pixel_norm(x_small)
    jax.block_until_ready(out_small)
    assert jnp.allclose(out_small, _reference(x_small), atol=1e-5, rtol=1e-5)

    # bf16 inputs: exercises dtype-native sublane rounding and chunked upcast.
    x_bf16 = jax.random.normal(jax.random.PRNGKey(2), (2, 8, 16, 16),
                               dtype=jnp.bfloat16)
    out_bf16 = pixel_norm(x_bf16)
    jax.block_until_ready(out_bf16)
    assert out_bf16.dtype == jnp.bfloat16
    assert jnp.allclose(out_bf16.astype(jnp.float32),
                        _reference(x_bf16).astype(jnp.float32),
                        atol=1e-2, rtol=1e-2)

    print("KERNEL_OK")
</pallas_src>

<mosaic_0001>
module attributes {stable_mosaic.version = 11 : i64} {
  func.func @_pixelnorm_kernel(%arg0: i32, %arg1: i32, %arg2: memref<1x4x2x128xf32, #tpu.memory_space<vmem>>, %arg3: memref<1x4x2x128xf32, #tpu.memory_space<vmem>>) attributes {dimension_semantics = [#tpu.dimension_semantics<parallel>, #tpu.dimension_semantics<parallel>], iteration_bounds = array<i64: 2, 1>, scalar_prefetch = 0 : i64, scratch_operands = 0 : i64, tpu.core_type = #tpu.core_type<tc>, window_params = [{transform_indices = @transform_0, window_bounds = array<i64: 1, 4, 2, 128>}, {transform_indices = @transform_1, window_bounds = array<i64: 1, 4, 2, 128>}]} {
    %cst = arith.constant 0.000000e+00 : f32
    %0 = vector.broadcast %cst : f32 to vector<2x128xf32>
    %c0 = arith.constant 0 : index
    %c0_0 = arith.constant 0 : index
    %c0_1 = arith.constant 0 : index
    %c0_2 = arith.constant 0 : index
    %1 = vector.load %arg2[%c0, %c0_0, %c0_1, %c0_2] : memref<1x4x2x128xf32, #tpu.memory_space<vmem>>, vector<1x4x2x128xf32>
    %2 = vector.shape_cast %1 : vector<1x4x2x128xf32> to vector<4x2x128xf32>
    %3 = arith.mulf %2, %2 : vector<4x2x128xf32>
    %cst_3 = arith.constant dense<0.000000e+00> : vector<2x128xf32>
    %4 = vector.multi_reduction <add>, %3, %cst_3 [0] : vector<4x2x128xf32> to vector<2x128xf32>
    %5 = arith.addf %0, %4 : vector<2x128xf32>
    %cst_4 = arith.constant 2.500000e-01 : f32
    %6 = vector.broadcast %cst_4 : f32 to vector<2x128xf32>
    %7 = arith.mulf %5, %6 : vector<2x128xf32>
    %cst_5 = arith.constant 9.99999993E-9 : f32
    %8 = vector.broadcast %cst_5 : f32 to vector<2x128xf32>
    %9 = arith.addf %7, %8 : vector<2x128xf32>
    %10 = math.rsqrt %9 : vector<2x128xf32>
    %c0_6 = arith.constant 0 : index
    %c0_7 = arith.constant 0 : index
    %c0_8 = arith.constant 0 : index
    %c0_9 = arith.constant 0 : index
    %11 = vector.load %arg2[%c0_6, %c0_7, %c0_8, %c0_9] : memref<1x4x2x128xf32, #tpu.memory_space<vmem>>, vector<1x4x2x128xf32>
    %12 = vector.shape_cast %11 : vector<1x4x2x128xf32> to vector<4x2x128xf32>
    %13 = vector.shape_cast %10 : vector<2x128xf32> to vector<1x2x128xf32>
    %14 = vector.broadcast %13 : vector<1x2x128xf32> to vector<4x2x128xf32>
    %15 = arith.mulf %12, %14 : vector<4x2x128xf32>
    %c0_10 = arith.constant 0 : index
    %c0_11 = arith.constant 0 : index
    %c0_12 = arith.constant 0 : index
    %c0_13 = arith.constant 0 : index
    %16 = vector.load %arg3[%c0_10, %c0_11, %c0_12, %c0_13] : memref<1x4x2x128xf32, #tpu.memory_space<vmem>>, vector<1x4x2x128xf32>
    %17 = vector.shape_cast %16 : vector<1x4x2x128xf32> to vector<4x2x128xf32>
    %18 = vector.shape_cast %15 : vector<4x2x128xf32> to vector<1x4x2x128xf32>
    tpu.vector_store %arg3[%c0_10, %c0_11, %c0_12, %c0_13], %18 {strides = array<i32>} : memref<1x4x2x128xf32, #tpu.memory_space<vmem>>, vector<1x4x2x128xf32>,
    return
  }
  func.func @transform_0(%arg0: i32, %arg1: i32) -> (i32, i32, i32, i32) {
    %c0_i32 = arith.constant 0 : i32
    %c0_i32_0 = arith.constant 0 : i32
    %c0_i32_1 = arith.constant 0 : i32
    return %arg0, %c0_i32, %arg1, %c0_i32_0 : i32, i32, i32, i32
  }
  func.func @transform_1(%arg0: i32, %arg1: i32) -> (i32, i32, i32, i32) {
    %c0_i32 = arith.constant 0 : i32
    %c0_i32_0 = arith.constant 0 : i32
    %c0_i32_1 = arith.constant 0 : i32
    return %arg0, %c0_i32, %arg1, %c0_i32_0 : i32, i32, i32, i32
  }
}

</mosaic_0001>

<llo_original>
// kernel: tpu_custom_call.1
$region0: #{tpu_custom_call.1}
  #allocation0 [shape = 'u32[]', space=smem, size = 0x4, offset = 0x4, fixed_abs, tag = 'smem constant byte address 0x4 - core index']
  #allocation1 [shape = 'u32[144,128]{1,0:T(1,128)}', space=vmem, size = 0x12000, scoped, tag = 'internal scratch']
  %s0 = inlined_call_operand.hbm [shape: f32[2,4,2,128], index: 0, kind: input, shape index: {}]
  %s1 = inlined_call_operand.hbm [shape: f32[2,4,2,128], index: 1, kind: output, shape index: {}]
  %s2 = sld [smem:[#allocation0]]
  $region41: #{tpu_custom_call.1} parent=0
    _
  %s4 = ssub.s32 1, %s2
  %s5 = scalar_select 0, %s4, %s2
  $region1: #{tpu_custom_call.1} parent=0
    #allocation2 [shape = 'u8[8192]{0}', space=vmem, size = 0x2000, scoped, tag = 'input window, operand 0']
    #allocation3 [shape = 's32[2]{0}', space=sflag, size = 0x8, scoped, tag = 'scoped memory for tpu_custom_call.1']
    #allocation4 [shape = 's32[2]{0}', space=sflag, size = 0x8, scoped, tag = 'scoped memory for tpu_custom_call.1']
    #allocation5 [shape = 'u8[8192]{0}', space=vmem, size = 0x2000, scoped, tag = 'output window, operand 0']
    %6 = vsyncpa [#allocation3], 0
    %s7 = scalar_lea.sflag [#allocation3], 1
    %8 = vsyncpa %s7, 0
    %9 = vsyncpa [#allocation4], 0
    %s10 = scalar_lea.sflag [#allocation4], 1
    %11 = vsyncpa %s10, 0
    loop: start=0, step=1, limit=4
    $region2: #{tpu_custom_call.1} parent=1 // loop_pre_header
      _
    $region3: #{tpu_custom_call.1} parent=1 // loop_header
      %s13 = sphi 0, %s17
      %p14 = scmp.ge.s32.totalorder %s13, 4
      %s20 = sphi 0, %s32
      %s21 = sphi 0, %s28
      %s22 = sphi 0, %s20
      %s23 = sphi 0, %s21
      %s24 = sphi 0, %s22
      %s25 = sphi 0, %s23
      %s37 = sphi 0, %s39
      %s40 = sphi 0, %s37
      %s41 = sphi 0, %s40
      %s57 = sphi 0, %s41
      %s65 = sphi 0, %s67
      %s68 = sphi 0, %s65
      %s69 = sphi 0, %s68
      %s85 = sphi 0, %s69
    $region4: #{tpu_custom_call.1} parent=1 // loop_header_branch
      %16 = sbr.rel (%p14) target = $region8
    $region5: #{tpu_custom_call.1} parent=1 // loop_body
      %s18 = ssub.s32 %s13, 1
      %s19 = ssub.s32 %s13, 2
      %s26 = sadd.s32 1, %s21
      %p27 = scmp.ge.s32.totalorder %s26, 1
      %s28 = scalar_select %p27, 0, %s26
      %s29 = sadd.s32 1, %s20
      %s30 = scalar_select %p27, %s29, %s20
      %p31 = scmp.ge.s32.totalorder %s30, 2
      %s32 = scalar_select %p31, 0, %s30
      %s33 = ssub.s32 %s20, %s32
      %s34 = ssub.s32 %s21, %s28
      %s35 = sor.u32 %s33, %s34
      %p36 = scmp.eq.s32.totalorder %s35, 0
      %s38 = sadd.s32 %s37, 1
      %s39 = scalar_select %p36, %s37, %s38
      %p42 = pneg %p36
      %p43 = scmp.eq.s32.totalorder %s13, 1
      %p44 = por %p42, %p43
      %p45 = scmp.ne.s32.totalorder %s37, %s40
      %p46 = scmp.eq.s32.totalorder %s13, 0
      %p47 = por %p45, %p46
      %p48 = scmp.ne.s32.totalorder %s37, %s40
      %p49 = scmp.eq.s32.totalorder %s18, 1
      %p50 = por %p48, %p49
      %p51 = scmp.ne.s32.totalorder %s40, %s41
      %p52 = scmp.eq.s32.totalorder %s18, 0
      %p53 = por %p51, %p52
      %p54 = scmp.ne.s32.totalorder %s40, %s41
      %p55 = scmp.eq.s32.totalorder %s19, 1
      %p56 = por %p54, %p55
      %p58 = scmp.ne.s32.totalorder %s41, %s57
      %p59 = scmp.eq.s32.totalorder %s19, 0
      %p60 = por %p58, %p59
      %s61 = ssub.s32 %s20, %s32
      %s62 = ssub.s32 %s21, %s28
      %s63 = sor.u32 %s61, %s62
      %p64 = scmp.eq.s32.totalorder %s63, 0
      %s66 = sadd.s32 %s65, 1
      %s67 = scalar_select %p64, %s65, %s66
      %p70 = pneg %p64
      %p71 = scmp.eq.s32.totalorder %s13, 1
      %p72 = por %p70, %p71
      %p73 = scmp.ne.s32.totalorder %s65, %s68
      %p74 = scmp.eq.s32.totalorder %s13, 0
      %p75 = por %p73, %p74
      %p76 = scmp.ne.s32.totalorder %s65, %s68
      %p77 = scmp.eq.s32.totalorder %s18, 1
      %p78 = por %p76, %p77
      %p79 = scmp.ne.s32.totalorder %s68, %s69
      %p80 = scmp.eq.s32.totalorder %s18, 0
      %p81 = por %p79, %p80
      %p82 = scmp.ne.s32.totalorder %s68, %s69
      %p83 = scmp.eq.s32.totalorder %s19, 1
      %p84 = por %p82, %p83
      %p86 = scmp.ne.s32.totalorder %s69, %s85
      %p87 = scmp.eq.s32.totalorder %s19, 0
      %p88 = por %p86, %p87
      %p89 = scmp.le.s32.totalorder 1, %s13
      %p90 = scmp.lt.s32.totalorder %s13, 3
      %p91 = pnand %p89, %p90
      %p92 = pneg %p91
      // Predicated region
      $region9: #{tpu_custom_call.1} parent=5 // pred_check
        _
      $region10: #{tpu_custom_call.1} parent=5 // pred_check_branch
        %94 = sbr.rel (%p91) target = $region12
      $region11: #{tpu_custom_call.1} parent=5 // pred_region
        %s95 = ssub.s32 %s13, 1
      $region12: #{tpu_custom_call.1} parent=5 // pred_fallthru
        _
      %p96 = scmp.lt.s32.totalorder %s13, 2
      // Predicated region
      $region13: #{tpu_custom_call.1} parent=5 // pred_check
        %p97 = pneg %p96
      $region14: #{tpu_custom_call.1} parent=5 // pred_check_branch
        %99 = sbr.rel (%p97) target = $region16
      $region15: #{tpu_custom_call.1} parent=5 // pred_region
        // Predicated region
        $region17: #{tpu_custom_call.1} parent=15 // pred_check
          %p100 = pneg %p47
        $region18: #{tpu_custom_call.1} parent=15 // pred_check_branch
          %102 = sbr.rel (%p100) target = $region20
        $region19: #{tpu_custom_call.1} parent=15 // pred_region
          %s103 = sand.u32 %s37, 1
          %s104 = scalar_lea.sflag [#allocation3], %s103
          %s105 = sand.u32 %s37, 1
          %s106 = smul.addr %s105, 8
          %s107 = scalar_lea.vmem [#allocation2], %s106
          %s109 = ssub.s32 128, 128
          %110 = vsyncadd %s104, %s109
          %s111 = smul.addr %s20, 4
          %s112 = sadd.s32 %s21, %s111
          %s113 = smul.addr %s112, 32
          %s114 = scalar_lea.hbm %s0, %s113
          %s115 = sshll.u32 %s107, 4
          %s116 = int_to_ptr.vmem [resolvable:$true] %s115
          %121 = dma.hbm_to_vmem [thread:$0]  %s114, 128, %s116, %s104, 32, 32, 2
        $region20: #{tpu_custom_call.1} parent=15 // pred_fallthru
          _
      $region16: #{tpu_custom_call.1} parent=5 // pred_fallthru
        _
      %p122 = scmp.le.s32.totalorder 1, %s13
      %p123 = scmp.lt.s32.totalorder %s13, 3
      %p124 = pnand %p122, %p123
      %p125 = pneg %p124
      // Predicated region
      $region21: #{tpu_custom_call.1} parent=5 // pred_check
        _
      $region22: #{tpu_custom_call.1} parent=5 // pred_check_branch
        %127 = sbr.rel (%p124) target = $region24
      $region23: #{tpu_custom_call.1} parent=5 // pred_region
        %s128 = ssub.s32 %s13, 1
        %s129 = sand.u32 %s40, 1
        %s130 = scalar_lea.sflag [#allocation3], %s129
        %s131 = sand.u32 %s40, 1
        %s132 = smul.addr %s131, 8
        %s133 = scalar_lea.vmem [#allocation2], %s132
        // Predicated region
        $region25: #{tpu_custom_call.1} parent=23 // pred_check
          %p134 = pneg %p53
        $region26: #{tpu_custom_call.1} parent=23 // pred_check_branch
          %136 = sbr.rel (%p134) target = $region28
        $region27: #{tpu_custom_call.1} parent=23 // pred_region
          %137 = dma.done %s130, 128
        $region28: #{tpu_custom_call.1} parent=23 // pred_fallthru
          _
        %s138 = sand.u32 %s40, 1
        %s139 = scalar_lea.sflag [#allocation3], %s138
        %s140 = sand.u32 %s40, 1
        %s141 = smul.addr %s140, 8
        %s142 = scalar_lea.vmem [#allocation2], %s141
        %p143 = pneg %p53
        %p144 = pneg %p50
        %p145 = pneg %p81
        %p146 = pneg %p78
        %s147 = sand.u32 %s68, 1
        %s148 = scalar_lea.sflag [#allocation4], %s147
        %s149 = sand.u32 %s68, 1
        %s150 = smul.addr %s149, 8
        %s151 = scalar_lea.vmem [#allocation5], %s150
        %v152 = vld [vmem:[%s133] sm:$0x3]
        %v153 = vld [vmem:[%s133 + $0x2] sm:$0x3]
        %v154 = vld [vmem:[%s133 + $0x4] sm:$0x3]
        %v155 = vld [vmem:[%s133 + $0x6] sm:$0x3]
        %v156 = vmul.f32 %v152, %v152
        %v157 = vmul.f32 %v153, %v153
        %v158 = vmul.f32 %v154, %v154
        %v159 = vmul.f32 %v155, %v155
        %vm160 = vcmask 1041408
        %v161 = vsel %vm160, %v156, 0.0
        %v162 = vsel %vm160, %v157, 0.0
        %v163 = vadd.f32 %v161, %v162
        %v164 = vsel %vm160, %v158, 0.0
        %v165 = vadd.f32 %v163, %v164
        %v166 = vsel %vm160, %v159, 0.0
        %v167 = vadd.f32 %v165, %v166
        %v168 = vadd.f32 %v167, 0.0
        %v169 = vmul.f32 %v168, 0.25
        %v170 = vadd.f32 %v169, 1e-08
        %v171 = vrsqrt.pop %v170
        %v172 = vmul.f32 %v152, %v171
        %v173 = vmul.f32 %v153, %v171
        %v174 = vmul.f32 %v154, %v171
        %v175 = vmul.f32 %v155, %v171
        %176 = vst [vmem:[%s151] sm:$0x3] %v172
        %177 = vst [vmem:[%s151 + $0x2] sm:$0x3] %v173
        %178 = vst [vmem:[%s151 + $0x4] sm:$0x3] %v174
        %179 = vst [vmem:[%s151 + $0x6] sm:$0x3] %v175
        %s180 = sand.u32 %s68, 1
        %s181 = scalar_lea.sflag [#allocation4], %s180
        %s182 = sand.u32 %s68, 1
        %s183 = smul.addr %s182, 8
        %s184 = scalar_lea.vmem [#allocation5], %s183
        // Predicated region
        $region29: #{tpu_custom_call.1} parent=23 // pred_check
          %p185 = pneg %p78
        $region30: #{tpu_custom_call.1} parent=23 // pred_check_branch
          %187 = sbr.rel (%p185) target = $region32
        $region31: #{tpu_custom_call.1} parent=23 // pred_region
          %s189 = ssub.s32 128, 128
          %190 = vsyncadd %s181, %s189
          %s191 = smul.addr %s22, 4
          %s192 = sadd.s32 %s23, %s191
          %s193 = smul.addr %s192, 32
          %s194 = scalar_lea.hbm %s1, %s193
          %s195 = sshll.u32 %s184, 4
          %s196 = int_to_ptr.vmem [resolvable:$true] %s195
          %201 = dma.vmem_to_hbm [thread:$0]  %s196, 128, %s194, %s181, 32, 32, 2
        $region32: #{tpu_custom_call.1} parent=23 // pred_fallthru
          _
      $region24: #{tpu_custom_call.1} parent=5 // pred_fallthru
        _
      %p202 = scmp.le.s32.totalorder 2, %s13
      // Predicated region
      $region33: #{tpu_custom_call.1} parent=5 // pred_check
        %p203 = pneg %p202
      $region34: #{tpu_custom_call.1} parent=5 // pred_check_branch
        %205 = sbr.rel (%p203) target = $region36
      $region35: #{tpu_custom_call.1} parent=5 // pred_region
        %s206 = ssub.s32 %s13, 2
        // Predicated region
        $region37: #{tpu_custom_call.1} parent=35 // pred_check
          %p207 = pneg %p84
        $region38: #{tpu_custom_call.1} parent=35 // pred_check_branch
          %209 = sbr.rel (%p207) target = $region40
        $region39: #{tpu_custom_call.1} parent=35 // pred_region
          %s210 = sand.u32 %s69, 1
          %s211 = scalar_lea.sflag [#allocation4], %s210
          %s212 = sand.u32 %s69, 1
          %s213 = smul.addr %s212, 8
          %s214 = scalar_lea.vmem [#allocation5], %s213
          %215 = dma.done %s211, 128
        $region40: #{tpu_custom_call.1} parent=35 // pred_fallthru
          _
      $region36: #{tpu_custom_call.1} parent=5 // pred_fallthru
        _
    $region6: #{tpu_custom_call.1} parent=1 // loop_footer
      %s17 = sadd.s32 1, %s13
    $region7: #{tpu_custom_call.1} parent=1 // loop_footer_branch
      %12 = sbr.rel target = $region3
    $region8: #{tpu_custom_call.1} parent=1 // loop_exit
      _
    %216 = vsyncpa [#allocation3], 1
    %s217 = scalar_lea.sflag [#allocation3], 1
    %218 = vsyncpa %s217, 1
    %219 = vsyncpa [#allocation4], 1
    %s220 = scalar_lea.sflag [#allocation4], 1
    %221 = vsyncpa %s220, 1

</llo_original>
